<compile_context>
chip_gen: v6e
topology: v6e:2x2x1
jax: 0.10.0
libtpu: 0.0.40
codegen_flags: <defaults>
</compile_context>

<pallas_src>
import functools

import numpy as np
import jax
import jax.numpy as jnp
from jax import lax
from jax.experimental import pallas as pl
from jax.experimental.pallas import tpu as pltpu

HID = 5                      # hidden_dim
FC = 5                       # fc_hidden_dim
U_LAG = 10
Y_LAG = 10
IN_DIM = 1 + Y_LAG + U_LAG   # 21
OUT_DIM = 1
LANE = 128                   # TPU lane width; padded feature size
IN_PAD = 32                  # padded input-feature size (21 -> 32, sublane-aligned)
SEQ = 8                      # example sequence length


# ---------------------------------------------------------------------------
# Pallas kernel: whole sequence in one invocation.
# ---------------------------------------------------------------------------
def lstm_system_kernel(x_ref, wih_ref, whh_ref, bg_ref,
                       w1_ref, b1_ref, w2_ref, b2_ref, out_ref, *, seq):
    f32 = jnp.float32
    seq_pad = out_ref.shape[0]

    lane = lax.broadcasted_iota(jnp.int32, (1, LANE), 1)
    g_mask = jnp.logical_and(lane >= 2 * HID, lane < 3 * HID)   # g-gate lanes

    # (1) Whole-sequence input projection, biases folded in. Gate k lives in
    #     lanes [k*HID, (k+1)*HID); the 0.5 sigmoid pre-scale for i/f/o is
    #     already folded into the packed weights/bias.
    xg = (jnp.dot(x_ref[...], wih_ref[...], preferred_element_type=f32)
          + bg_ref[...])                                        # (seq_pad, LANE)

    # (2) Loop-invariant recurrent weight loaded once.
    whh = whh_ref[...]                                          # (LANE, LANE)

    # (3) Recurrence over the TRUE sequence length only, fully unrolled.
    #     h history stays in vregs (Python list), no per-step VMEM store.
    # TODO(synk): for seq >> 32 switch the h history back to a VMEM scratch to
    #             bound vreg pressure, and batch sequences across sublanes
    #             (+ a "parallel" grid axis for v7x's two TensorCores).
    h = jnp.zeros((1, LANE), f32)
    c = jnp.zeros((1, LANE), f32)
    hs = []
    for t in range(seq):
        gates = xg[t:t + 1, :] + jnp.dot(h, whh, preferred_element_type=f32)
        # Single tanh for all four gates: sigmoid(z) = 0.5*tanh(z/2) + 0.5,
        # the /2 is pre-folded into the packed i/f/o weight columns.
        th = jnp.tanh(gates)
        act = jnp.where(g_mask, th, 0.5 * th + 0.5)
        i_a = act                                               # i at lanes 0:HID
        f_a = pltpu.roll(act, shift=LANE - HID, axis=1)         # f -> lanes 0:HID
        g_a = pltpu.roll(act, shift=LANE - 2 * HID, axis=1)     # g -> lanes 0:HID
        o_a = pltpu.roll(act, shift=LANE - 3 * HID, axis=1)     # o -> lanes 0:HID
        # No padded-lane masking: padded lanes stay bounded (products of values
        # with |.| <= 1) and hit exactly-zero rows of whh / w1 downstream.
        c = f_a * c + i_a * g_a
        h = o_a * jnp.tanh(c)
        hs.append(h)

    if seq < seq_pad:                                           # zero-init tail rows
        hs.append(jnp.zeros((seq_pad - seq, LANE), f32))
    h_hist = jnp.concatenate(hs, axis=0)                        # (seq_pad, LANE)

    # (4) Feed-forward head batched over all timesteps:
    #     F.relu(lstm_out) -> fc1 -> relu -> fc2, one lane-dense store.
    a = jnp.maximum(h_hist, 0.0)
    a = jnp.dot(a, w1_ref[...], preferred_element_type=f32) + b1_ref[...]
    a = jnp.maximum(a, 0.0)
    y = jnp.dot(a, w2_ref[...], preferred_element_type=f32) + b2_ref[...]
    out_ref[...] = y


# ---------------------------------------------------------------------------
# Parameter packing (done ONCE, outside the per-call path).
# ---------------------------------------------------------------------------
def pack_params(params):
    W_ih, W_hh, b_ih, b_hh, w1, b1, w2, b2 = params
    # PyTorch gate order (i, f, g, o) along rows -> transpose puts gate k in
    # output lanes [k*HID, (k+1)*HID). Fold the sigmoid-via-tanh 0.5 pre-scale
    # into the i/f/o columns (g keeps full scale).
    gate_scale = jnp.concatenate([
        jnp.full((2 * HID,), 0.5, jnp.float32),   # i, f
        jnp.ones((HID,), jnp.float32),            # g
        jnp.full((HID,), 0.5, jnp.float32),       # o
    ])
    wih_p = jnp.zeros((IN_PAD, LANE), jnp.float32).at[:IN_DIM, :4 * HID].set(
        W_ih.T * gate_scale)
    whh_p = jnp.zeros((LANE, LANE), jnp.float32).at[:HID, :4 * HID].set(
        W_hh.T * gate_scale)
    bg_p = jnp.zeros((1, LANE), jnp.float32).at[0, :4 * HID].set(
        (b_ih + b_hh) * gate_scale)
    w1_p = jnp.zeros((LANE, LANE), jnp.float32).at[:HID, :FC].set(w1.T)
    b1_p = jnp.zeros((1, LANE), jnp.float32).at[0, :FC].set(b1)
    w2_p = jnp.zeros((LANE, LANE), jnp.float32).at[:FC, :OUT_DIM].set(w2.T)
    b2_p = jnp.zeros((1, LANE), jnp.float32).at[0, :OUT_DIM].set(b2)
    return (wih_p, whh_p, bg_p, w1_p, b1_p, w2_p, b2_p)


# ---------------------------------------------------------------------------
# Forward wrapper: pad x, call pallas_call once.
# ---------------------------------------------------------------------------
@jax.jit
def lstm_system_forward(x, packed):
    """x: (seq, IN_DIM) f32. packed: output of pack_params. -> (seq, OUT_DIM)."""
    seq = x.shape[0]                              # static at trace time
    seq_pad = max(8, -(-seq // 8) * 8)            # sublane-aligned sequence length

    x_p = jnp.zeros((seq_pad, IN_PAD), jnp.float32).at[:seq, :IN_DIM].set(x)

    vmem = pl.BlockSpec(memory_space=pltpu.MemorySpace.VMEM)
    out = pl.pallas_call(
        functools.partial(lstm_system_kernel, seq=seq),
        out_shape=jax.ShapeDtypeStruct((seq_pad, LANE), jnp.float32),
        in_specs=[vmem] * 8,
        out_specs=vmem,
    )(x_p, *packed)

    # TODO(synk): multi-sequence workloads should batch B sequences across
    # sublanes ((B,128) h/c state) and shard sequence-batches over a
    # dimension_semantics=("parallel",) grid axis for v7x's 2 TensorCores.
    return out[:seq, :OUT_DIM]


# ---------------------------------------------------------------------------
# Pure-JAX reference (mirrors the PyTorch forward exactly).
# ---------------------------------------------------------------------------
def lstm_system_ref(x, params):
    W_ih, W_hh, b_ih, b_hh, w1, b1, w2, b2 = params

    def step(carry, x_t):
        h, c = carry
        gates = W_ih @ x_t + b_ih + W_hh @ h + b_hh
        i = jax.nn.sigmoid(gates[0:HID])
        f = jax.nn.sigmoid(gates[HID:2 * HID])
        g = jnp.tanh(gates[2 * HID:3 * HID])
        o = jax.nn.sigmoid(gates[3 * HID:4 * HID])
        c = f * c + i * g
        h = o * jnp.tanh(c)
        return (h, c), h

    (_, _), hs = lax.scan(step, (jnp.zeros(HID), jnp.zeros(HID)), x)
    a = jnp.maximum(hs, 0.0)
    a = jnp.maximum(a @ w1.T + b1, 0.0)
    return a @ w2.T + b2


def init_params(key):
    ks = jax.random.split(key, 8)
    s = 1.0 / np.sqrt(HID)   # PyTorch default uniform(-1/sqrt(H), 1/sqrt(H))
    W_ih = jax.random.uniform(ks[0], (4 * HID, IN_DIM), jnp.float32, -s, s)
    W_hh = jax.random.uniform(ks[1], (4 * HID, HID), jnp.float32, -s, s)
    b_ih = jax.random.uniform(ks[2], (4 * HID,), jnp.float32, -s, s)
    b_hh = jax.random.uniform(ks[3], (4 * HID,), jnp.float32, -s, s)
    w1 = jax.random.uniform(ks[4], (FC, HID), jnp.float32, -s, s)
    b1 = jax.random.uniform(ks[5], (FC,), jnp.float32, -s, s)
    s2 = 1.0 / np.sqrt(FC)
    w2 = jax.random.uniform(ks[6], (OUT_DIM, FC), jnp.float32, -s2, s2)
    b2 = jax.random.uniform(ks[7], (OUT_DIM,), jnp.float32, -s2, s2)
    return (W_ih, W_hh, b_ih, b_hh, w1, b1, w2, b2)


if __name__ == "__main__":
    key = jax.random.PRNGKey(0)
    k_param, k_x = jax.random.split(key)
    params = init_params(k_param)
    packed = jax.tree.map(jax.block_until_ready, pack_params(params))  # once, not per call
    x = jax.random.normal(k_x, (SEQ, IN_DIM), jnp.float32)

    out = jax.block_until_ready(lstm_system_forward(x, packed))
    ref = jax.block_until_ready(lstm_system_ref(x, params))

    assert out.shape == (SEQ, OUT_DIM)
    np.testing.assert_allclose(np.asarray(out), np.asarray(ref),
                               rtol=1e-5, atol=2e-5)
    print("KERNEL_OK")
</pallas_src>

<mosaic_0001>
module attributes {stable_mosaic.version = 11 : i64} {
  func.func @lstm_system_kernel(%arg0: memref<8x32xf32, #tpu.memory_space<vmem>>, %arg1: memref<32x128xf32, #tpu.memory_space<vmem>>, %arg2: memref<128x128xf32, #tpu.memory_space<vmem>>, %arg3: memref<1x128xf32, #tpu.memory_space<vmem>>, %arg4: memref<128x128xf32, #tpu.memory_space<vmem>>, %arg5: memref<1x128xf32, #tpu.memory_space<vmem>>, %arg6: memref<128x128xf32, #tpu.memory_space<vmem>>, %arg7: memref<1x128xf32, #tpu.memory_space<vmem>>, %arg8: memref<8x128xf32, #tpu.memory_space<vmem>>) attributes {dimension_semantics = [], scalar_prefetch = 0 : i64, scratch_operands = 0 : i64, tpu.core_type = #tpu.core_type<tc>} {
    %0 = tpu.iota {dimensions = array<i32: 1>} : vector<1x128xi32>
    %c10_i32 = arith.constant 10 : i32
    %1 = vector.broadcast %c10_i32 : i32 to vector<1x128xi32>
    %2 = arith.cmpi sge, %0, %1 : vector<1x128xi32>
    %c15_i32 = arith.constant 15 : i32
    %3 = vector.broadcast %c15_i32 : i32 to vector<1x128xi32>
    %4 = arith.cmpi slt, %0, %3 : vector<1x128xi32>
    %5 = arith.andi %2, %4 : vector<1x128xi1>
    %c0 = arith.constant 0 : index
    %c0_0 = arith.constant 0 : index
    %6 = vector.load %arg0[%c0, %c0_0] : memref<8x32xf32, #tpu.memory_space<vmem>>, vector<8x32xf32>
    %c0_1 = arith.constant 0 : index
    %c0_2 = arith.constant 0 : index
    %7 = vector.load %arg1[%c0_1, %c0_2] : memref<32x128xf32, #tpu.memory_space<vmem>>, vector<32x128xf32>
    %cst = arith.constant dense<0.000000e+00> : vector<8x128xf32>
    %8 = tpu.matmul %6, %7, %cst {dimension_numbers = #tpu.dot_dimension_numbers<[1], [0], [0], [1], [0, 0, 1, 1], [], []>} : vector<8x32xf32>, vector<32x128xf32>, vector<8x128xf32> -> vector<8x128xf32>
    %c0_3 = arith.constant 0 : index
    %c0_4 = arith.constant 0 : index
    %9 = vector.load %arg3[%c0_3, %c0_4] : memref<1x128xf32, #tpu.memory_space<vmem>>, vector<1x128xf32>
    %10 = vector.broadcast %9 : vector<1x128xf32> to vector<8x128xf32>
    %11 = arith.addf %8, %10 : vector<8x128xf32>
    %c0_5 = arith.constant 0 : index
    %c0_6 = arith.constant 0 : index
    %12 = vector.load %arg2[%c0_5, %c0_6] : memref<128x128xf32, #tpu.memory_space<vmem>>, vector<128x128xf32>
    %cst_7 = arith.constant 0.000000e+00 : f32
    %13 = vector.broadcast %cst_7 : f32 to vector<1x128xf32>
    %cst_8 = arith.constant 0.000000e+00 : f32
    %14 = vector.broadcast %cst_8 : f32 to vector<1x128xf32>
    %15 = vector.extract_strided_slice %11 {offsets = [0, 0], sizes = [1, 128], strides = [1, 1]} : vector<8x128xf32> to vector<1x128xf32>
    %cst_9 = arith.constant dense<0.000000e+00> : vector<1x128xf32>
    %16 = tpu.matmul %13, %12, %cst_9 {dimension_numbers = #tpu.dot_dimension_numbers<[1], [0], [0], [1], [0, 0, 1, 1], [], []>} : vector<1x128xf32>, vector<128x128xf32>, vector<1x128xf32> -> vector<1x128xf32>
    %17 = arith.addf %15, %16 : vector<1x128xf32>
    %18 = math.tanh %17 : vector<1x128xf32>
    %cst_10 = arith.constant 5.000000e-01 : f32
    %19 = vector.broadcast %cst_10 : f32 to vector<1x128xf32>
    %20 = arith.mulf %19, %18 : vector<1x128xf32>
    %cst_11 = arith.constant 5.000000e-01 : f32
    %21 = vector.broadcast %cst_11 : f32 to vector<1x128xf32>
    %22 = arith.addf %20, %21 : vector<1x128xf32>
    %23 = arith.select %5, %18, %22 : vector<1x128xi1>, vector<1x128xf32>
    %c123_i32 = arith.constant 123 : i32
    %24 = tpu.dynamic_rotate %23 by %c123_i32 dim 1 : vector<1x128xf32>, i32 -> vector<1x128xf32>
    %c118_i32 = arith.constant 118 : i32
    %25 = tpu.dynamic_rotate %23 by %c118_i32 dim 1 : vector<1x128xf32>, i32 -> vector<1x128xf32>
    %c113_i32 = arith.constant 113 : i32
    %26 = tpu.dynamic_rotate %23 by %c113_i32 dim 1 : vector<1x128xf32>, i32 -> vector<1x128xf32>
    %27 = arith.mulf %24, %14 : vector<1x128xf32>
    %28 = arith.mulf %23, %25 : vector<1x128xf32>
    %29 = arith.addf %27, %28 : vector<1x128xf32>
    %30 = math.tanh %29 : vector<1x128xf32>
    %31 = arith.mulf %26, %30 : vector<1x128xf32>
    %32 = vector.extract_strided_slice %11 {offsets = [1, 0], sizes = [1, 128], strides = [1, 1]} : vector<8x128xf32> to vector<1x128xf32>
    %cst_12 = arith.constant dense<0.000000e+00> : vector<1x128xf32>
    %33 = tpu.matmul %31, %12, %cst_12 {dimension_numbers = #tpu.dot_dimension_numbers<[1], [0], [0], [1], [0, 0, 1, 1], [], []>} : vector<1x128xf32>, vector<128x128xf32>, vector<1x128xf32> -> vector<1x128xf32>
    %34 = arith.addf %32, %33 : vector<1x128xf32>
    %35 = math.tanh %34 : vector<1x128xf32>
    %cst_13 = arith.constant 5.000000e-01 : f32
    %36 = vector.broadcast %cst_13 : f32 to vector<1x128xf32>
    %37 = arith.mulf %36, %35 : vector<1x128xf32>
    %cst_14 = arith.constant 5.000000e-01 : f32
    %38 = vector.broadcast %cst_14 : f32 to vector<1x128xf32>
    %39 = arith.addf %37, %38 : vector<1x128xf32>
    %40 = arith.select %5, %35, %39 : vector<1x128xi1>, vector<1x128xf32>
    %c123_i32_15 = arith.constant 123 : i32
    %41 = tpu.dynamic_rotate %40 by %c123_i32_15 dim 1 : vector<1x128xf32>, i32 -> vector<1x128xf32>
    %c118_i32_16 = arith.constant 118 : i32
    %42 = tpu.dynamic_rotate %40 by %c118_i32_16 dim 1 : vector<1x128xf32>, i32 -> vector<1x128xf32>
    %c113_i32_17 = arith.constant 113 : i32
    %43 = tpu.dynamic_rotate %40 by %c113_i32_17 dim 1 : vector<1x128xf32>, i32 -> vector<1x128xf32>
    %44 = arith.mulf %41, %29 : vector<1x128xf32>
    %45 = arith.mulf %40, %42 : vector<1x128xf32>
    %46 = arith.addf %44, %45 : vector<1x128xf32>
    %47 = math.tanh %46 : vector<1x128xf32>
    %48 = arith.mulf %43, %47 : vector<1x128xf32>
    %49 = vector.extract_strided_slice %11 {offsets = [2, 0], sizes = [1, 128], strides = [1, 1]} : vector<8x128xf32> to vector<1x128xf32>
    %cst_18 = arith.constant dense<0.000000e+00> : vector<1x128xf32>
    %50 = tpu.matmul %48, %12, %cst_18 {dimension_numbers = #tpu.dot_dimension_numbers<[1], [0], [0], [1], [0, 0, 1, 1], [], []>} : vector<1x128xf32>, vector<128x128xf32>, vector<1x128xf32> -> vector<1x128xf32>
    %51 = arith.addf %49, %50 : vector<1x128xf32>
    %52 = math.tanh %51 : vector<1x128xf32>
    %cst_19 = arith.constant 5.000000e-01 : f32
    %53 = vector.broadcast %cst_19 : f32 to vector<1x128xf32>
    %54 = arith.mulf %53, %52 : vector<1x128xf32>
    %cst_20 = arith.constant 5.000000e-01 : f32
    %55 = vector.broadcast %cst_20 : f32 to vector<1x128xf32>
    %56 = arith.addf %54, %55 : vector<1x128xf32>
    %57 = arith.select %5, %52, %56 : vector<1x128xi1>, vector<1x128xf32>
    %c123_i32_21 = arith.constant 123 : i32
    %58 = tpu.dynamic_rotate %57 by %c123_i32_21 dim 1 : vector<1x128xf32>, i32 -> vector<1x128xf32>
    %c118_i32_22 = arith.constant 118 : i32
    %59 = tpu.dynamic_rotate %57 by %c118_i32_22 dim 1 : vector<1x128xf32>, i32 -> vector<1x128xf32>
    %c113_i32_23 = arith.constant 113 : i32
    %60 = tpu.dynamic_rotate %57 by %c113_i32_23 dim 1 : vector<1x128xf32>, i32 -> vector<1x128xf32>
    %61 = arith.mulf %58, %46 : vector<1x128xf32>
    %62 = arith.mulf %57, %59 : vector<1x128xf32>
    %63 = arith.addf %61, %62 : vector<1x128xf32>
    %64 = math.tanh %63 : vector<1x128xf32>
    %65 = arith.mulf %60, %64 : vector<1x128xf32>
    %66 = vector.extract_strided_slice %11 {offsets = [3, 0], sizes = [1, 128], strides = [1, 1]} : vector<8x128xf32> to vector<1x128xf32>
    %cst_24 = arith.constant dense<0.000000e+00> : vector<1x128xf32>
    %67 = tpu.matmul %65, %12, %cst_24 {dimension_numbers = #tpu.dot_dimension_numbers<[1], [0], [0], [1], [0, 0, 1, 1], [], []>} : vector<1x128xf32>, vector<128x128xf32>, vector<1x128xf32> -> vector<1x128xf32>
    %68 = arith.addf %66, %67 : vector<1x128xf32>
    %69 = math.tanh %68 : vector<1x128xf32>
    %cst_25 = arith.constant 5.000000e-01 : f32
    %70 = vector.broadcast %cst_25 : f32 to vector<1x128xf32>
    %71 = arith.mulf %70, %69 : vector<1x128xf32>
    %cst_26 = arith.constant 5.000000e-01 : f32
    %72 = vector.broadcast %cst_26 : f32 to vector<1x128xf32>
    %73 = arith.addf %71, %72 : vector<1x128xf32>
    %74 = arith.select %5, %69, %73 : vector<1x128xi1>, vector<1x128xf32>
    %c123_i32_27 = arith.constant 123 : i32
    %75 = tpu.dynamic_rotate %74 by %c123_i32_27 dim 1 : vector<1x128xf32>, i32 -> vector<1x128xf32>
    %c118_i32_28 = arith.constant 118 : i32
    %76 = tpu.dynamic_rotate %74 by %c118_i32_28 dim 1 : vector<1x128xf32>, i32 -> vector<1x128xf32>
    %c113_i32_29 = arith.constant 113 : i32
    %77 = tpu.dynamic_rotate %74 by %c113_i32_29 dim 1 : vector<1x128xf32>, i32 -> vector<1x128xf32>
    %78 = arith.mulf %75, %63 : vector<1x128xf32>
    %79 = arith.mulf %74, %76 : vector<1x128xf32>
    %80 = arith.addf %78, %79 : vector<1x128xf32>
    %81 = math.tanh %80 : vector<1x128xf32>
    %82 = arith.mulf %77, %81 : vector<1x128xf32>
    %83 = vector.extract_strided_slice %11 {offsets = [4, 0], sizes = [1, 128], strides = [1, 1]} : vector<8x128xf32> to vector<1x128xf32>
    %cst_30 = arith.constant dense<0.000000e+00> : vector<1x128xf32>
    %84 = tpu.matmul %82, %12, %cst_30 {dimension_numbers = #tpu.dot_dimension_numbers<[1], [0], [0], [1], [0, 0, 1, 1], [], []>} : vector<1x128xf32>, vector<128x128xf32>, vector<1x128xf32> -> vector<1x128xf32>
    %85 = arith.addf %83, %84 : vector<1x128xf32>
    %86 = math.tanh %85 : vector<1x128xf32>
    %cst_31 = arith.constant 5.000000e-01 : f32
    %87 = vector.broadcast %cst_31 : f32 to vector<1x128xf32>
    %88 = arith.mulf %87, %86 : vector<1x128xf32>
    %cst_32 = arith.constant 5.000000e-01 : f32
    %89 = vector.broadcast %cst_32 : f32 to vector<1x128xf32>
    %90 = arith.addf %88, %89 : vector<1x128xf32>
    %91 = arith.select %5, %86, %90 : vector<1x128xi1>, vector<1x128xf32>
    %c123_i32_33 = arith.constant 123 : i32
    %92 = tpu.dynamic_rotate %91 by %c123_i32_33 dim 1 : vector<1x128xf32>, i32 -> vector<1x128xf32>
    %c118_i32_34 = arith.constant 118 : i32
    %93 = tpu.dynamic_rotate %91 by %c118_i32_34 dim 1 : vector<1x128xf32>, i32 -> vector<1x128xf32>
    %c113_i32_35 = arith.constant 113 : i32
    %94 = tpu.dynamic_rotate %91 by %c113_i32_35 dim 1 : vector<1x128xf32>, i32 -> vector<1x128xf32>
    %95 = arith.mulf %92, %80 : vector<1x128xf32>
    %96 = arith.mulf %91, %93 : vector<1x128xf32>
    %97 = arith.addf %95, %96 : vector<1x128xf32>
    %98 = math.tanh %97 : vector<1x128xf32>
    %99 = arith.mulf %94, %98 : vector<1x128xf32>
    %100 = vector.extract_strided_slice %11 {offsets = [5, 0], sizes = [1, 128], strides = [1, 1]} : vector<8x128xf32> to vector<1x128xf32>
    %cst_36 = arith.constant dense<0.000000e+00> : vector<1x128xf32>
    %101 = tpu.matmul %99, %12, %cst_36 {dimension_numbers = #tpu.dot_dimension_numbers<[1], [0], [0], [1], [0, 0, 1, 1], [], []>} : vector<1x128xf32>, vector<128x128xf32>, vector<1x128xf32> -> vector<1x128xf32>
    %102 = arith.addf %100, %101 : vector<1x128xf32>
    %103 = math.tanh %102 : vector<1x128xf32>
    %cst_37 = arith.constant 5.000000e-01 : f32
    %104 = vector.broadcast %cst_37 : f32 to vector<1x128xf32>
    %105 = arith.mulf %104, %103 : vector<1x128xf32>
    %cst_38 = arith.constant 5.000000e-01 : f32
    %106 = vector.broadcast %cst_38 : f32 to vector<1x128xf32>
    %107 = arith.addf %105, %106 : vector<1x128xf32>
    %108 = arith.select %5, %103, %107 : vector<1x128xi1>, vector<1x128xf32>
    %c123_i32_39 = arith.constant 123 : i32
    %109 = tpu.dynamic_rotate %108 by %c123_i32_39 dim 1 : vector<1x128xf32>, i32 -> vector<1x128xf32>
    %c118_i32_40 = arith.constant 118 : i32
    %110 = tpu.dynamic_rotate %108 by %c118_i32_40 dim 1 : vector<1x128xf32>, i32 -> vector<1x128xf32>
    %c113_i32_41 = arith.constant 113 : i32
    %111 = tpu.dynamic_rotate %108 by %c113_i32_41 dim 1 : vector<1x128xf32>, i32 -> vector<1x128xf32>
    %112 = arith.mulf %109, %97 : vector<1x128xf32>
    %113 = arith.mulf %108, %110 : vector<1x128xf32>
    %114 = arith.addf %112, %113 : vector<1x128xf32>
    %115 = math.tanh %114 : vector<1x128xf32>
    %116 = arith.mulf %111, %115 : vector<1x128xf32>
    %117 = vector.extract_strided_slice %11 {offsets = [6, 0], sizes = [1, 128], strides = [1, 1]} : vector<8x128xf32> to vector<1x128xf32>
    %cst_42 = arith.constant dense<0.000000e+00> : vector<1x128xf32>
    %118 = tpu.matmul %116, %12, %cst_42 {dimension_numbers = #tpu.dot_dimension_numbers<[1], [0], [0], [1], [0, 0, 1, 1], [], []>} : vector<1x128xf32>, vector<128x128xf32>, vector<1x128xf32> -> vector<1x128xf32>
    %119 = arith.addf %117, %118 : vector<1x128xf32>
    %120 = math.tanh %119 : vector<1x128xf32>
    %cst_43 = arith.constant 5.000000e-01 : f32
    %121 = vector.broadcast %cst_43 : f32 to vector<1x128xf32>
    %122 = arith.mulf %121, %120 : vector<1x128xf32>
    %cst_44 = arith.constant 5.000000e-01 : f32
    %123 = vector.broadcast %cst_44 : f32 to vector<1x128xf32>
    %124 = arith.addf %122, %123 : vector<1x128xf32>
    %125 = arith.select %5, %120, %124 : vector<1x128xi1>, vector<1x128xf32>
    %c123_i32_45 = arith.constant 123 : i32
    %126 = tpu.dynamic_rotate %125 by %c123_i32_45 dim 1 : vector<1x128xf32>, i32 -> vector<1x128xf32>
    %c118_i32_46 = arith.constant 118 : i32
    %127 = tpu.dynamic_rotate %125 by %c118_i32_46 dim 1 : vector<1x128xf32>, i32 -> vector<1x128xf32>
    %c113_i32_47 = arith.constant 113 : i32
    %128 = tpu.dynamic_rotate %125 by %c113_i32_47 dim 1 : vector<1x128xf32>, i32 -> vector<1x128xf32>
    %129 = arith.mulf %126, %114 : vector<1x128xf32>
    %130 = arith.mulf %125, %127 : vector<1x128xf32>
    %131 = arith.addf %129, %130 : vector<1x128xf32>
    %132 = math.tanh %131 : vector<1x128xf32>
    %133 = arith.mulf %128, %132 : vector<1x128xf32>
    %134 = vector.extract_strided_slice %11 {offsets = [7, 0], sizes = [1, 128], strides = [1, 1]} : vector<8x128xf32> to vector<1x128xf32>
    %cst_48 = arith.constant dense<0.000000e+00> : vector<1x128xf32>
    %135 = tpu.matmul %133, %12, %cst_48 {dimension_numbers = #tpu.dot_dimension_numbers<[1], [0], [0], [1], [0, 0, 1, 1], [], []>} : vector<1x128xf32>, vector<128x128xf32>, vector<1x128xf32> -> vector<1x128xf32>
    %136 = arith.addf %134, %135 : vector<1x128xf32>
    %137 = math.tanh %136 : vector<1x128xf32>
    %cst_49 = arith.constant 5.000000e-01 : f32
    %138 = vector.broadcast %cst_49 : f32 to vector<1x128xf32>
    %139 = arith.mulf %138, %137 : vector<1x128xf32>
    %cst_50 = arith.constant 5.000000e-01 : f32
    %140 = vector.broadcast %cst_50 : f32 to vector<1x128xf32>
    %141 = arith.addf %139, %140 : vector<1x128xf32>
    %142 = arith.select %5, %137, %141 : vector<1x128xi1>, vector<1x128xf32>
    %c123_i32_51 = arith.constant 123 : i32
    %143 = tpu.dynamic_rotate %142 by %c123_i32_51 dim 1 : vector<1x128xf32>, i32 -> vector<1x128xf32>
    %c118_i32_52 = arith.constant 118 : i32
    %144 = tpu.dynamic_rotate %142 by %c118_i32_52 dim 1 : vector<1x128xf32>, i32 -> vector<1x128xf32>
    %c113_i32_53 = arith.constant 113 : i32
    %145 = tpu.dynamic_rotate %142 by %c113_i32_53 dim 1 : vector<1x128xf32>, i32 -> vector<1x128xf32>
    %146 = arith.mulf %143, %131 : vector<1x128xf32>
    %147 = arith.mulf %142, %144 : vector<1x128xf32>
    %148 = arith.addf %146, %147 : vector<1x128xf32>
    %149 = math.tanh %148 : vector<1x128xf32>
    %150 = arith.mulf %145, %149 : vector<1x128xf32>
    %151 = tpu.concatenate %31, %48, %65, %82, %99, %116, %133, %150 in 0 : vector<1x128xf32>, vector<1x128xf32>, vector<1x128xf32>, vector<1x128xf32>, vector<1x128xf32>, vector<1x128xf32>, vector<1x128xf32>, vector<1x128xf32> -> vector<8x128xf32>
    %cst_54 = arith.constant 0.000000e+00 : f32
    %152 = vector.broadcast %cst_54 : f32 to vector<8x128xf32>
    %153 = arith.maximumf %151, %152 : vector<8x128xf32>
    %c0_55 = arith.constant 0 : index
    %c0_56 = arith.constant 0 : index
    %154 = vector.load %arg4[%c0_55, %c0_56] : memref<128x128xf32, #tpu.memory_space<vmem>>, vector<128x128xf32>
    %cst_57 = arith.constant dense<0.000000e+00> : vector<8x128xf32>
    %155 = tpu.matmul %153, %154, %cst_57 {dimension_numbers = #tpu.dot_dimension_numbers<[1], [0], [0], [1], [0, 0, 1, 1], [], []>} : vector<8x128xf32>, vector<128x128xf32>, vector<8x128xf32> -> vector<8x128xf32>
    %c0_58 = arith.constant 0 : index
    %c0_59 = arith.constant 0 : index
    %156 = vector.load %arg5[%c0_58, %c0_59] : memref<1x128xf32, #tpu.memory_space<vmem>>, vector<1x128xf32>
    %157 = vector.broadcast %156 : vector<1x128xf32> to vector<8x128xf32>
    %158 = arith.addf %155, %157 : vector<8x128xf32>
    %cst_60 = arith.constant 0.000000e+00 : f32
    %159 = vector.broadcast %cst_60 : f32 to vector<8x128xf32>
    %160 = arith.maximumf %158, %159 : vector<8x128xf32>
    %c0_61 = arith.constant 0 : index
    %c0_62 = arith.constant 0 : index
    %161 = vector.load %arg6[%c0_61, %c0_62] : memref<128x128xf32, #tpu.memory_space<vmem>>, vector<128x128xf32>
    %cst_63 = arith.constant dense<0.000000e+00> : vector<8x128xf32>
    %162 = tpu.matmul %160, %161, %cst_63 {dimension_numbers = #tpu.dot_dimension_numbers<[1], [0], [0], [1], [0, 0, 1, 1], [], []>} : vector<8x128xf32>, vector<128x128xf32>, vector<8x128xf32> -> vector<8x128xf32>
    %c0_64 = arith.constant 0 : index
    %c0_65 = arith.constant 0 : index
    %163 = vector.load %arg7[%c0_64, %c0_65] : memref<1x128xf32, #tpu.memory_space<vmem>>, vector<1x128xf32>
    %164 = vector.broadcast %163 : vector<1x128xf32> to vector<8x128xf32>
    %165 = arith.addf %162, %164 : vector<8x128xf32>
    %c0_66 = arith.constant 0 : index
    %c0_67 = arith.constant 0 : index
    %166 = vector.load %arg8[%c0_66, %c0_67] : memref<8x128xf32, #tpu.memory_space<vmem>>, vector<8x128xf32>
    tpu.vector_store %arg8[%c0_66, %c0_67], %165 {strides = array<i32>} : memref<8x128xf32, #tpu.memory_space<vmem>>, vector<8x128xf32>,
    return
  }
}

</mosaic_0001>

<llo_original>
// kernel: lstm_system_forward.1
$region0: #{lstm_system_forward.1}
  #allocation0 [shape = 'u32[]', space=smem, size = 0x4, offset = 0x4, fixed_abs, tag = 'smem constant byte address 0x4 - core index']
  #allocation1 [shape = 'u32[144,128]{1,0:T(1,128)}', space=vmem, size = 0x12000, scoped, tag = 'internal scratch']
  %s0 = inlined_call_operand.vmem [shape: f32[8,32], index: 0, kind: input, shape index: {}]
  %s1 = inlined_call_operand.vmem [shape: f32[32,128], index: 1, kind: input, shape index: {}]
  %s2 = inlined_call_operand.hbm [shape: f32[128,128], index: 2, kind: input, shape index: {}]
  %s3 = inlined_call_operand.vmem [shape: f32[1,128], index: 3, kind: input, shape index: {}]
  %s4 = inlined_call_operand.hbm [shape: f32[128,128], index: 4, kind: input, shape index: {}]
  %s5 = inlined_call_operand.vmem [shape: f32[1,128], index: 5, kind: input, shape index: {}]
  %s6 = inlined_call_operand.hbm [shape: f32[128,128], index: 6, kind: input, shape index: {}]
  %s7 = inlined_call_operand.vmem [shape: f32[1,128], index: 7, kind: input, shape index: {}]
  %s8 = inlined_call_operand.vmem [shape: f32[8,128], index: 8, kind: output, shape index: {}]
  %s9 = sld [smem:[#allocation0]]
  $region54: #{lstm_system_forward.1} parent=0
    _
  %s11 = ssub.s32 1, %s9
  %s12 = scalar_select 0, %s11, %s9
  $region1: #{lstm_system_forward.1} parent=0
    #allocation2 [shape = 'u8[65536]{0}', space=vmem, size = 0x10000, scoped, tag = 'input window, operand 2, single buffered']
    #allocation3 [shape = 's32[1]{0}', space=sflag, size = 0x4, scoped, tag = 'scoped memory for lstm_system_forward.1']
    #allocation4 [shape = 'u8[65536]{0}', space=vmem, size = 0x10000, scoped, tag = 'input window, operand 4, single buffered']
    #allocation5 [shape = 's32[1]{0}', space=sflag, size = 0x4, scoped, tag = 'scoped memory for lstm_system_forward.1']
    #allocation6 [shape = 'u8[65536]{0}', space=vmem, size = 0x10000, scoped, tag = 'input window, operand 6, single buffered']
    %13 = vsyncpa [#allocation3], 0
    %14 = vsyncpa [#allocation5], 0
    // Predicated region
    $region2: #{lstm_system_forward.1} parent=1 // pred_check
      _
    $region3: #{lstm_system_forward.1} parent=1 // pred_check_branch
      %16 = sbr.rel (0) target = $region5
    $region4: #{lstm_system_forward.1} parent=1 // pred_region
      _
    $region5: #{lstm_system_forward.1} parent=1 // pred_fallthru
      _
    // Predicated region
    $region6: #{lstm_system_forward.1} parent=1 // pred_check
      _
    $region7: #{lstm_system_forward.1} parent=1 // pred_check_branch
      %18 = sbr.rel (0) target = $region9
    $region8: #{lstm_system_forward.1} parent=1 // pred_region
      _
    $region9: #{lstm_system_forward.1} parent=1 // pred_fallthru
      _
    // Predicated region
    $region10: #{lstm_system_forward.1} parent=1 // pred_check
      _
    $region11: #{lstm_system_forward.1} parent=1 // pred_check_branch
      %20 = sbr.rel (0) target = $region13
    $region12: #{lstm_system_forward.1} parent=1 // pred_region
      %s22 = ssub.s32 2048, 2048
      %23 = vsyncadd [#allocation3], %s22
      %s24 = sshll.u32 [#allocation2], 4
      %s25 = int_to_ptr.vmem [resolvable:$true] %s24
      %30 = dma.hbm_to_vmem [thread:$0]  %s2, 2048, %s25, [#allocation3], 128, 128, 8
    $region13: #{lstm_system_forward.1} parent=1 // pred_fallthru
      _
    // Predicated region
    $region14: #{lstm_system_forward.1} parent=1 // pred_check
      _
    $region15: #{lstm_system_forward.1} parent=1 // pred_check_branch
      %32 = sbr.rel (0) target = $region17
    $region16: #{lstm_system_forward.1} parent=1 // pred_region
      _
    $region17: #{lstm_system_forward.1} parent=1 // pred_fallthru
      _
    // Predicated region
    $region18: #{lstm_system_forward.1} parent=1 // pred_check
      _
    $region19: #{lstm_system_forward.1} parent=1 // pred_check_branch
      %34 = sbr.rel (0) target = $region21
    $region20: #{lstm_system_forward.1} parent=1 // pred_region
      %s36 = ssub.s32 2048, 2048
      %37 = vsyncadd [#allocation5], %s36
      %s38 = sshll.u32 [#allocation4], 4
      %s39 = int_to_ptr.vmem [resolvable:$true] %s38
      %44 = dma.hbm_to_vmem [thread:$0]  %s4, 2048, %s39, [#allocation5], 128, 128, 8
    $region21: #{lstm_system_forward.1} parent=1 // pred_fallthru
      _
    // Predicated region
    $region22: #{lstm_system_forward.1} parent=1 // pred_check
      _
    $region23: #{lstm_system_forward.1} parent=1 // pred_check_branch
      %46 = sbr.rel (0) target = $region25
    $region24: #{lstm_system_forward.1} parent=1 // pred_region
      _
    $region25: #{lstm_system_forward.1} parent=1 // pred_fallthru
      _
    // Predicated region
    $region26: #{lstm_system_forward.1} parent=1 // pred_check
      _
    $region27: #{lstm_system_forward.1} parent=1 // pred_check_branch
      %48 = sbr.rel (0) target = $region29
    $region28: #{lstm_system_forward.1} parent=1 // pred_region
      %s50 = ssub.s32 2048, 2048
      %51 = vsyncadd [#allocation5], %s50
      %s52 = sshll.u32 [#allocation6], 4
      %s53 = int_to_ptr.vmem [resolvable:$true] %s52
      %58 = dma.hbm_to_vmem [thread:$0]  %s6, 2048, %s53, [#allocation5], 128, 128, 8
    $region29: #{lstm_system_forward.1} parent=1 // pred_fallthru
      _
    // Predicated region
    $region30: #{lstm_system_forward.1} parent=1 // pred_check
      _
    $region31: #{lstm_system_forward.1} parent=1 // pred_check_branch
      %60 = sbr.rel (0) target = $region33
    $region32: #{lstm_system_forward.1} parent=1 // pred_region
      _
    $region33: #{lstm_system_forward.1} parent=1 // pred_fallthru
      _
    // Predicated region
    $region34: #{lstm_system_forward.1} parent=1 // pred_check
      _
    $region35: #{lstm_system_forward.1} parent=1 // pred_check_branch
      %62 = sbr.rel (0) target = $region37
    $region36: #{lstm_system_forward.1} parent=1 // pred_region
      %63 = dma.done [#allocation3], 2048
    $region37: #{lstm_system_forward.1} parent=1 // pred_fallthru
      _
    // Predicated region
    $region38: #{lstm_system_forward.1} parent=1 // pred_check
      _
    $region39: #{lstm_system_forward.1} parent=1 // pred_check_branch
      %65 = sbr.rel (0) target = $region41
    $region40: #{lstm_system_forward.1} parent=1 // pred_region
      %66 = dma.done [#allocation5], 2048
    $region41: #{lstm_system_forward.1} parent=1 // pred_fallthru
      _
    // Predicated region
    $region42: #{lstm_system_forward.1} parent=1 // pred_check
      _
    $region43: #{lstm_system_forward.1} parent=1 // pred_check_branch
      %68 = sbr.rel (0) target = $region45
    $region44: #{lstm_system_forward.1} parent=1 // pred_region
      %69 = dma.done [#allocation5], 2048
    $region45: #{lstm_system_forward.1} parent=1 // pred_fallthru
      _
    %v70 = vlaneseq
    %v71 = vand.u32 %v70, 127
    %vm72 = vcmp.ge.s32.totalorder %v71, 10
    %vm73 = vcmp.lt.s32.totalorder %v71, 15
    %vm74 = vmand %vm72, %vm73
    %v75 = vld [vmem:[%s0] sm:$0xff]
    %v76 = vld [vmem:[%s1] sm:$0xff]
    %v77 = vld [vmem:[%s1 + $0x8] sm:$0xff]
    %v78 = vld [vmem:[%s1 + $0x10] sm:$0xff]
    %v79 = vld [vmem:[%s1 + $0x18] sm:$0xff]
    %v80 = vld [vmem:[%s3] sm:$0x1]
    %v82 = vlaneseq
    %v83 = vshrl.u32 %v82, 7
    %v84 = vsub.s32 0, %v83
    %v85 = vrot.slane %v80, %v84
    %vm87 = vcmask 261120
    %v89 = vsel %vm87, %v75, 0
    %91 = vmatprep.subr.mxu0 0.0
    %92 = vmatpush1.msra.mxu0 0.0
    %93 = vmatprep.subr.mxu0 0.0
    %94 = vmatpush1.msra.mxu0 0.0
    %95 = vmatprep.subr.mxu0 0.0
    %96 = vmatpush1.msra.mxu0 0.0
    %97 = vmatprep.subr.mxu0 0.0
    %98 = vmatpush1.msra.mxu0 0.0
    %99 = vmatprep.subr.mxu0 0.0
    %100 = vmatpush1.msra.mxu0 0.0
    %101 = vmatprep.subr.mxu0 0.0
    %102 = vmatpush1.msra.mxu0 0.0
    %103 = vmatprep.subr.mxu0 0.0
    %104 = vmatpush1.msra.mxu0 0.0
    %105 = vmatprep.subr.mxu0 0.0
    %106 = vmatpush1.msra.mxu0 0.0
    %107 = vmatprep.subr.mxu0 0.0
    %108 = vmatpush1.msra.mxu0 0.0
    %109 = vmatprep.subr.mxu0 0.0
    %110 = vmatpush1.msra.mxu0 0.0
    %111 = vmatprep.subr.mxu0 0.0
    %112 = vmatpush1.msra.mxu0 0.0
    %113 = vmatprep.subr.mxu0 0.0
    %114 = vmatpush1.msra.mxu0 0.0
    %115 = vmatprep.subr.mxu0 0.0
    %116 = vmatpush1.msra.mxu0 %v79
    %117 = vmatprep.subr.mxu0 0.0
    %118 = vmatpush1.msra.mxu0 %v78
    %119 = vmatprep.subr.mxu0 0.0
    %120 = vmatpush1.msra.mxu0 %v77
    %121 = vmatprep.subr.mxu0 0.0
    %122 = vmatpush1.msra.mxu0 %v76
    %123 = vmatprep.subr.mxu0 0.0
    %124 = vmatpush2.msra.mxu0 0.0
    %125 = vmatprep.subr.mxu0 0.0
    %126 = vmatpush2.msra.mxu0 0.0
    %127 = vmatprep.subr.mxu0 0.0
    %128 = vmatpush2.msra.mxu0 0.0
    %129 = vmatprep.subr.mxu0 0.0
    %130 = vmatpush2.msra.mxu0 0.0
    %131 = vmatprep.subr.mxu0 0.0
    %132 = vmatpush2.msra.mxu0 0.0
    %133 = vmatprep.subr.mxu0 0.0
    %134 = vmatpush2.msra.mxu0 0.0
    %135 = vmatprep.subr.mxu0 0.0
    %136 = vmatpush2.msra.mxu0 0.0
    %137 = vmatprep.subr.mxu0 0.0
    %138 = vmatpush2.msra.mxu0 0.0
    %139 = vmatprep.subr.mxu0 0.0
    %140 = vmatpush2.msra.mxu0 0.0
    %141 = vmatprep.subr.mxu0 0.0
    %142 = vmatpush2.msra.mxu0 0.0
    %143 = vmatprep.subr.mxu0 0.0
    %144 = vmatpush2.msra.mxu0 0.0
    %145 = vmatprep.subr.mxu0 0.0
    %146 = vmatpush2.msra.mxu0 0.0
    %147 = vmatprep.subr.mxu0 0.0
    %148 = vmatpush2.msra.mxu0 0.0
    %149 = vmatprep.subr.mxu0 0.0
    %150 = vmatpush2.msra.mxu0 0.0
    %151 = vmatprep.subr.mxu0 0.0
    %152 = vmatpush2.msra.mxu0 0.0
    %153 = vmatprep.subr.mxu0 0.0
    %154 = vmatpush2.msra.mxu0 0.0
    %155 = vmatprep.mubr.f32.mxu0 0.0
    %156 = vmatmul.mubr.f32.gmra.mxu0 %v89
    %v157 = vpop.f32.mrf.mxu0
    %v158 = vadd.f32 %v85, %v157
    %v159 = vpop.f32.mrf.mxu0
    %160 = vdwg.mxu0
    %v161 = vld [vmem:[#allocation2] sm:$0xff]
    %v162 = vld [vmem:[#allocation2 + $0x8] sm:$0xff]
    %v163 = vld [vmem:[#allocation2 + $0x10] sm:$0xff]
    %v164 = vld [vmem:[#allocation2 + $0x18] sm:$0xff]
    %v165 = vld [vmem:[#allocation2 + $0x20] sm:$0xff]
    %v166 = vld [vmem:[#allocation2 + $0x28] sm:$0xff]
    %v167 = vld [vmem:[#allocation2 + $0x30] sm:$0xff]
    %v168 = vld [vmem:[#allocation2 + $0x38] sm:$0xff]
    %v169 = vld [vmem:[#allocation2 + $0x40] sm:$0xff]
    %v170 = vld [vmem:[#allocation2 + $0x48] sm:$0xff]
    %v171 = vld [vmem:[#allocation2 + $0x50] sm:$0xff]
    %v172 = vld [vmem:[#allocation2 + $0x58] sm:$0xff]
    %v173 = vld [vmem:[#allocation2 + $0x60] sm:$0xff]
    %v174 = vld [vmem:[#allocation2 + $0x68] sm:$0xff]
    %v175 = vld [vmem:[#allocation2 + $0x70] sm:$0xff]
    %v176 = vld [vmem:[#allocation2 + $0x78] sm:$0xff]
    %177 = vmatprep.subr.mxu0 0.0
    %178 = vmatpush1.msra.mxu0 %v176
    %179 = vmatprep.subr.mxu0 0.0
    %180 = vmatpush1.msra.mxu0 %v175
    %181 = vmatprep.subr.mxu0 0.0
    %182 = vmatpush1.msra.mxu0 %v174
    %183 = vmatprep.subr.mxu0 0.0
    %184 = vmatpush1.msra.mxu0 %v173
    %185 = vmatprep.subr.mxu0 0.0
    %186 = vmatpush1.msra.mxu0 %v172
    %187 = vmatprep.subr.mxu0 0.0
    %188 = vmatpush1.msra.mxu0 %v171
    %189 = vmatprep.subr.mxu0 0.0
    %190 = vmatpush1.msra.mxu0 %v170
    %191 = vmatprep.subr.mxu0 0.0
    %192 = vmatpush1.msra.mxu0 %v169
    %193 = vmatprep.subr.mxu0 0.0
    %194 = vmatpush1.msra.mxu0 %v168
    %195 = vmatprep.subr.mxu0 0.0
    %196 = vmatpush1.msra.mxu0 %v167
    %197 = vmatprep.subr.mxu0 0.0
    %198 = vmatpush1.msra.mxu0 %v166
    %199 = vmatprep.subr.mxu0 0.0
    %200 = vmatpush1.msra.mxu0 %v165
    %201 = vmatprep.subr.mxu0 0.0
    %202 = vmatpush1.msra.mxu0 %v164
    %203 = vmatprep.subr.mxu0 0.0
    %204 = vmatpush1.msra.mxu0 %v163
    %205 = vmatprep.subr.mxu0 0.0
    %206 = vmatpush1.msra.mxu0 %v162
    %207 = vmatprep.subr.mxu0 0.0
    %208 = vmatpush1.msra.mxu0 %v161
    %209 = vmatprep.subr.mxu0 0.0
    %210 = vmatpush2.msra.mxu0 0.0
    %211 = vmatprep.subr.mxu0 0.0
    %212 = vmatpush2.msra.mxu0 0.0
    %213 = vmatprep.subr.mxu0 0.0
    %214 = vmatpush2.msra.mxu0 0.0
    %215 = vmatprep.subr.mxu0 0.0
    %216 = vmatpush2.msra.mxu0 0.0
    %217 = vmatprep.subr.mxu0 0.0
    %218 = vmatpush2.msra.mxu0 0.0
    %219 = vmatprep.subr.mxu0 0.0
    %220 = vmatpush2.msra.mxu0 0.0
    %221 = vmatprep.subr.mxu0 0.0
    %222 = vmatpush2.msra.mxu0 0.0
    %223 = vmatprep.subr.mxu0 0.0
    %224 = vmatpush2.msra.mxu0 0.0
    %225 = vmatprep.subr.mxu0 0.0
    %226 = vmatpush2.msra.mxu0 0.0
    %227 = vmatprep.subr.mxu0 0.0
    %228 = vmatpush2.msra.mxu0 0.0
    %229 = vmatprep.subr.mxu0 0.0
    %230 = vmatpush2.msra.mxu0 0.0
    %231 = vmatprep.subr.mxu0 0.0
    %232 = vmatpush2.msra.mxu0 0.0
    %233 = vmatprep.subr.mxu0 0.0
    %234 = vmatpush2.msra.mxu0 0.0
    %235 = vmatprep.subr.mxu0 0.0
    %236 = vmatpush2.msra.mxu0 0.0
    %237 = vmatprep.subr.mxu0 0.0
    %238 = vmatpush2.msra.mxu0 0.0
    %239 = vmatprep.subr.mxu0 0.0
    %240 = vmatpush2.msra.mxu0 0.0
    %241 = vmatprep.mubr.f32.mxu0 0.0
    %242 = vmatmul.mubr.f32.gmra.mxu0 0.0
    %v243 = vpop.f32.mrf.mxu0
    %v244 = vadd.f32 0.0, %v243
    %v245 = vpop.f32.mrf.mxu0
    %246 = vdwg.mxu0
    %v247 = vadd.f32 %v158, %v244
    %v248 = vtanh.pop %v247
    %v249 = vmul.f32 %v248, 0.5
    %v250 = vadd.f32 %v249, 0.5
    %v251 = vsel %vm74, %v248, %v250
    %252 = vrot.lane.b32.xlu0 %v251, 123
    %v253 = vpop.permute.xlu0 %252
    %254 = vrot.lane.b32.xlu0 %v251, 118
    %v255 = vpop.permute.xlu0 %254
    %256 = vrot.lane.b32.xlu0 %v251, 113
    %v257 = vpop.permute.xlu0 %256
    %v258 = vmul.f32 %v253, 0.0
    %v259 = vmul.f32 %v251, %v255
    %v260 = vadd.f32 %v258, %v259
    %v261 = vtanh.pop %v260
    %v262 = vmul.f32 %v257, %v261
    %263 = vmatprep.subr.mxu0 0.0
    %264 = vmatpush1.msra.mxu0 %v176
    %265 = vmatprep.subr.mxu0 0.0
    %266 = vmatpush1.msra.mxu0 %v175
    %267 = vmatprep.subr.mxu0 0.0
    %268 = vmatpush1.msra.mxu0 %v174
    %269 = vmatprep.subr.mxu0 0.0
    %270 = vmatpush1.msra.mxu0 %v173
    %271 = vmatprep.subr.mxu0 0.0
    %272 = vmatpush1.msra.mxu0 %v172
    %273 = vmatprep.subr.mxu0 0.0
    %274 = vmatpush1.msra.mxu0 %v171
    %275 = vmatprep.subr.mxu0 0.0
    %276 = vmatpush1.msra.mxu0 %v170
    %277 = vmatprep.subr.mxu0 0.0
    %278 = vmatpush1.msra.mxu0 %v169
    %279 = vmatprep.subr.mxu0 0.0
    %280 = vmatpush1.msra.mxu0 %v168
    %281 = vmatprep.subr.mxu0 0.0
    %282 = vmatpush1.msra.mxu0 %v167
    %283 = vmatprep.subr.mxu0 0.0
    %284 = vmatpush1.msra.mxu0 %v166
    %285 = vmatprep.subr.mxu0 0.0
    %286 = vmatpush1.msra.mxu0 %v165
    %287 = vmatprep.subr.mxu0 0.0
    %288 = vmatpush1.msra.mxu0 %v164
    %289 = vmatprep.subr.mxu0 0.0
    %290 = vmatpush1.msra.mxu0 %v163
    %291 = vmatprep.subr.mxu0 0.0
    %292 = vmatpush1.msra.mxu0 %v162
    %293 = vmatprep.subr.mxu0 0.0
    %294 = vmatpush1.msra.mxu0 %v161
    %295 = vmatprep.subr.mxu0 0.0
    %296 = vmatpush2.msra.mxu0 0.0
    %297 = vmatprep.subr.mxu0 0.0
    %298 = vmatpush2.msra.mxu0 0.0
    %299 = vmatprep.subr.mxu0 0.0
    %300 = vmatpush2.msra.mxu0 0.0
    %301 = vmatprep.subr.mxu0 0.0
    %302 = vmatpush2.msra.mxu0 0.0
    %303 = vmatprep.subr.mxu0 0.0
    %304 = vmatpush2.msra.mxu0 0.0
    %305 = vmatprep.subr.mxu0 0.0
    %306 = vmatpush2.msra.mxu0 0.0
    %307 = vmatprep.subr.mxu0 0.0
    %308 = vmatpush2.msra.mxu0 0.0
    %309 = vmatprep.subr.mxu0 0.0
    %310 = vmatpush2.msra.mxu0 0.0
    %311 = vmatprep.subr.mxu0 0.0
    %312 = vmatpush2.msra.mxu0 0.0
    %313 = vmatprep.subr.mxu0 0.0
    %314 = vmatpush2.msra.mxu0 0.0
    %315 = vmatprep.subr.mxu0 0.0
    %316 = vmatpush2.msra.mxu0 0.0
    %317 = vmatprep.subr.mxu0 0.0
    %318 = vmatpush2.msra.mxu0 0.0
    %319 = vmatprep.subr.mxu0 0.0
    %320 = vmatpush2.msra.mxu0 0.0
    %321 = vmatprep.subr.mxu0 0.0
    %322 = vmatpush2.msra.mxu0 0.0
    %323 = vmatprep.subr.mxu0 0.0
    %324 = vmatpush2.msra.mxu0 0.0
    %325 = vmatprep.subr.mxu0 0.0
    %326 = vmatpush2.msra.mxu0 0.0
    %327 = vmatprep.mubr.f32.mxu0 0.0
    %328 = vmatmul.mubr.f32.gmra.mxu0 %v262
    %v329 = vpop.f32.mrf.mxu0
    %v330 = vadd.f32 0.0, %v329
    %v331 = vpop.f32.mrf.mxu0
    %332 = vdwg.mxu0
    %v334 = vrot.slane %v330, 7
    %v336 = vadd.f32 %v158, %v334
    %v337 = vtanh.pop %v336
    %v338 = vmul.f32 %v337, 0.5
    %v339 = vadd.f32 %v338, 0.5
    %v340 = vsel %vm74, %v337, %v339
    %v342 = vrot.slane %v340, 1
    %344 = vrot.lane.b32.xlu0 %v342, 123
    %v345 = vpop.permute.xlu0 %344
    %346 = vrot.lane.b32.xlu0 %v342, 118
    %v347 = vpop.permute.xlu0 %346
    %348 = vrot.lane.b32.xlu0 %v342, 113
    %v349 = vpop.permute.xlu0 %348
    %v350 = vmul.f32 %v345, %v260
    %v352 = vrot.slane %v347, 7
    %v354 = vmul.f32 %v340, %v352
    %v356 = vrot.slane %v354, 1
    %v358 = vadd.f32 %v350, %v356
    %v359 = vtanh.pop %v358
    %v360 = vmul.f32 %v349, %v359
    %361 = vmatprep.subr.mxu0 0.0
    %362 = vmatpush1.msra.mxu0 %v176
    %363 = vmatprep.subr.mxu0 0.0
    %364 = vmatpush1.msra.mxu0 %v175
    %365 = vmatprep.subr.mxu0 0.0
    %366 = vmatpush1.msra.mxu0 %v174
    %367 = vmatprep.subr.mxu0 0.0
    %368 = vmatpush1.msra.mxu0 %v173
    %369 = vmatprep.subr.mxu0 0.0
    %370 = vmatpush1.msra.mxu0 %v172
    %371 = vmatprep.subr.mxu0 0.0
    %372 = vmatpush1.msra.mxu0 %v171
    %373 = vmatprep.subr.mxu0 0.0
    %374 = vmatpush1.msra.mxu0 %v170
    %375 = vmatprep.subr.mxu0 0.0
    %376 = vmatpush1.msra.mxu0 %v169
    %377 = vmatprep.subr.mxu0 0.0
    %378 = vmatpush1.msra.mxu0 %v168
    %379 = vmatprep.subr.mxu0 0.0
    %380 = vmatpush1.msra.mxu0 %v167
    %381 = vmatprep.subr.mxu0 0.0
    %382 = vmatpush1.msra.mxu0 %v166
    %383 = vmatprep.subr.mxu0 0.0
    %384 = vmatpush1.msra.mxu0 %v165
    %385 = vmatprep.subr.mxu0 0.0
    %386 = vmatpush1.msra.mxu0 %v164
    %387 = vmatprep.subr.mxu0 0.0
    %388 = vmatpush1.msra.mxu0 %v163
    %389 = vmatprep.subr.mxu0 0.0
    %390 = vmatpush1.msra.mxu0 %v162
    %391 = vmatprep.subr.mxu0 0.0
    %392 = vmatpush1.msra.mxu0 %v161
    %393 = vmatprep.subr.mxu0 0.0
    %394 = vmatpush2.msra.mxu0 0.0
    %395 = vmatprep.subr.mxu0 0.0
    %396 = vmatpush2.msra.mxu0 0.0
    %397 = vmatprep.subr.mxu0 0.0
    %398 = vmatpush2.msra.mxu0 0.0
    %399 = vmatprep.subr.mxu0 0.0
    %400 = vmatpush2.msra.mxu0 0.0
    %401 = vmatprep.subr.mxu0 0.0
    %402 = vmatpush2.msra.mxu0 0.0
    %403 = vmatprep.subr.mxu0 0.0
    %404 = vmatpush2.msra.mxu0 0.0
    %405 = vmatprep.subr.mxu0 0.0
    %406 = vmatpush2.msra.mxu0 0.0
    %407 = vmatprep.subr.mxu0 0.0
    %408 = vmatpush2.msra.mxu0 0.0
    %409 = vmatprep.subr.mxu0 0.0
    %410 = vmatpush2.msra.mxu0 0.0
    %411 = vmatprep.subr.mxu0 0.0
    %412 = vmatpush2.msra.mxu0 0.0
    %413 = vmatprep.subr.mxu0 0.0
    %414 = vmatpush2.msra.mxu0 0.0
    %415 = vmatprep.subr.mxu0 0.0
    %416 = vmatpush2.msra.mxu0 0.0
    %417 = vmatprep.subr.mxu0 0.0
    %418 = vmatpush2.msra.mxu0 0.0
    %419 = vmatprep.subr.mxu0 0.0
    %420 = vmatpush2.msra.mxu0 0.0
    %421 = vmatprep.subr.mxu0 0.0
    %422 = vmatpush2.msra.mxu0 0.0
    %423 = vmatprep.subr.mxu0 0.0
    %424 = vmatpush2.msra.mxu0 0.0
    %425 = vmatprep.mubr.f32.mxu0 0.0
    %426 = vmatmul.mubr.f32.gmra.mxu0 %v360
    %v427 = vpop.f32.mrf.mxu0
    %v428 = vadd.f32 0.0, %v427
    %v429 = vpop.f32.mrf.mxu0
    %430 = vdwg.mxu0
    %v432 = vrot.slane %v428, 6
    %v434 = vadd.f32 %v158, %v432
    %v435 = vtanh.pop %v434
    %v436 = vmul.f32 %v435, 0.5
    %v437 = vadd.f32 %v436, 0.5
    %v438 = vsel %vm74, %v435, %v437
    %v440 = vrot.slane %v438, 2
    %442 = vrot.lane.b32.xlu0 %v440, 123
    %v443 = vpop.permute.xlu0 %442
    %444 = vrot.lane.b32.xlu0 %v440, 118
    %v445 = vpop.permute.xlu0 %444
    %446 = vrot.lane.b32.xlu0 %v440, 113
    %v447 = vpop.permute.xlu0 %446
    %v448 = vmul.f32 %v443, %v358
    %v450 = vrot.slane %v445, 6
    %v452 = vmul.f32 %v438, %v450
    %v454 = vrot.slane %v452, 2
    %v456 = vadd.f32 %v448, %v454
    %v457 = vtanh.pop %v456
    %v458 = vmul.f32 %v447, %v457
    %459 = vmatprep.subr.mxu0 0.0
    %460 = vmatpush1.msra.mxu0 %v176
    %461 = vmatprep.subr.mxu0 0.0
    %462 = vmatpush1.msra.mxu0 %v175
    %463 = vmatprep.subr.mxu0 0.0
    %464 = vmatpush1.msra.mxu0 %v174
    %465 = vmatprep.subr.mxu0 0.0
    %466 = vmatpush1.msra.mxu0 %v173
    %467 = vmatprep.subr.mxu0 0.0
    %468 = vmatpush1.msra.mxu0 %v172
    %469 = vmatprep.subr.mxu0 0.0
    %470 = vmatpush1.msra.mxu0 %v171
    %471 = vmatprep.subr.mxu0 0.0
    %472 = vmatpush1.msra.mxu0 %v170
    %473 = vmatprep.subr.mxu0 0.0
    %474 = vmatpush1.msra.mxu0 %v169
    %475 = vmatprep.subr.mxu0 0.0
    %476 = vmatpush1.msra.mxu0 %v168
    %477 = vmatprep.subr.mxu0 0.0
    %478 = vmatpush1.msra.mxu0 %v167
    %479 = vmatprep.subr.mxu0 0.0
    %480 = vmatpush1.msra.mxu0 %v166
    %481 = vmatprep.subr.mxu0 0.0
    %482 = vmatpush1.msra.mxu0 %v165
    %483 = vmatprep.subr.mxu0 0.0
    %484 = vmatpush1.msra.mxu0 %v164
    %485 = vmatprep.subr.mxu0 0.0
    %486 = vmatpush1.msra.mxu0 %v163
    %487 = vmatprep.subr.mxu0 0.0
    %488 = vmatpush1.msra.mxu0 %v162
    %489 = vmatprep.subr.mxu0 0.0
    %490 = vmatpush1.msra.mxu0 %v161
    %491 = vmatprep.subr.mxu0 0.0
    %492 = vmatpush2.msra.mxu0 0.0
    %493 = vmatprep.subr.mxu0 0.0
    %494 = vmatpush2.msra.mxu0 0.0
    %495 = vmatprep.subr.mxu0 0.0
    %496 = vmatpush2.msra.mxu0 0.0
    %497 = vmatprep.subr.mxu0 0.0
    %498 = vmatpush2.msra.mxu0 0.0
    %499 = vmatprep.subr.mxu0 0.0
    %500 = vmatpush2.msra.mxu0 0.0
    %501 = vmatprep.subr.mxu0 0.0
    %502 = vmatpush2.msra.mxu0 0.0
    %503 = vmatprep.subr.mxu0 0.0
    %504 = vmatpush2.msra.mxu0 0.0
    %505 = vmatprep.subr.mxu0 0.0
    %506 = vmatpush2.msra.mxu0 0.0
    %507 = vmatprep.subr.mxu0 0.0
    %508 = vmatpush2.msra.mxu0 0.0
    %509 = vmatprep.subr.mxu0 0.0
    %510 = vmatpush2.msra.mxu0 0.0
    %511 = vmatprep.subr.mxu0 0.0
    %512 = vmatpush2.msra.mxu0 0.0
    %513 = vmatprep.subr.mxu0 0.0
    %514 = vmatpush2.msra.mxu0 0.0
    %515 = vmatprep.subr.mxu0 0.0
    %516 = vmatpush2.msra.mxu0 0.0
    %517 = vmatprep.subr.mxu0 0.0
    %518 = vmatpush2.msra.mxu0 0.0
    %519 = vmatprep.subr.mxu0 0.0
    %520 = vmatpush2.msra.mxu0 0.0
    %521 = vmatprep.subr.mxu0 0.0
    %522 = vmatpush2.msra.mxu0 0.0
    %523 = vmatprep.mubr.f32.mxu0 0.0
    %524 = vmatmul.mubr.f32.gmra.mxu0 %v458
    %v525 = vpop.f32.mrf.mxu0
    %v526 = vadd.f32 0.0, %v525
    %v527 = vpop.f32.mrf.mxu0
    %528 = vdwg.mxu0
    %v530 = vrot.slane %v526, 5
    %v532 = vadd.f32 %v158, %v530
    %v533 = vtanh.pop %v532
    %v534 = vmul.f32 %v533, 0.5
    %v535 = vadd.f32 %v534, 0.5
    %v536 = vsel %vm74, %v533, %v535
    %v538 = vrot.slane %v536, 3
    %540 = vrot.lane.b32.xlu0 %v538, 123
    %v541 = vpop.permute.xlu0 %540
    %542 = vrot.lane.b32.xlu0 %v538, 118
    %v543 = vpop.permute.xlu0 %542
    %544 = vrot.lane.b32.xlu0 %v538, 113
    %v545 = vpop.permute.xlu0 %544
    %v546 = vmul.f32 %v541, %v456
    %v548 = vrot.slane %v543, 5
    %v550 = vmul.f32 %v536, %v548
    %v552 = vrot.slane %v550, 3
    %v554 = vadd.f32 %v546, %v552
    %v555 = vtanh.pop %v554
    %v556 = vmul.f32 %v545, %v555
    %557 = vmatprep.subr.mxu0 0.0
    %558 = vmatpush1.msra.mxu0 %v176
    %559 = vmatprep.subr.mxu0 0.0
    %560 = vmatpush1.msra.mxu0 %v175
    %561 = vmatprep.subr.mxu0 0.0
    %562 = vmatpush1.msra.mxu0 %v174
    %563 = vmatprep.subr.mxu0 0.0
    %564 = vmatpush1.msra.mxu0 %v173
    %565 = vmatprep.subr.mxu0 0.0
    %566 = vmatpush1.msra.mxu0 %v172
    %567 = vmatprep.subr.mxu0 0.0
    %568 = vmatpush1.msra.mxu0 %v171
    %569 = vmatprep.subr.mxu0 0.0
    %570 = vmatpush1.msra.mxu0 %v170
    %571 = vmatprep.subr.mxu0 0.0
    %572 = vmatpush1.msra.mxu0 %v169
    %573 = vmatprep.subr.mxu0 0.0
    %574 = vmatpush1.msra.mxu0 %v168
    %575 = vmatprep.subr.mxu0 0.0
    %576 = vmatpush1.msra.mxu0 %v167
    %577 = vmatprep.subr.mxu0 0.0
    %578 = vmatpush1.msra.mxu0 %v166
    %579 = vmatprep.subr.mxu0 0.0
    %580 = vmatpush1.msra.mxu0 %v165
    %581 = vmatprep.subr.mxu0 0.0
    %582 = vmatpush1.msra.mxu0 %v164
    %583 = vmatprep.subr.mxu0 0.0
    %584 = vmatpush1.msra.mxu0 %v163
    %585 = vmatprep.subr.mxu0 0.0
    %586 = vmatpush1.msra.mxu0 %v162
    %587 = vmatprep.subr.mxu0 0.0
    %588 = vmatpush1.msra.mxu0 %v161
    %589 = vmatprep.subr.mxu0 0.0
    %590 = vmatpush2.msra.mxu0 0.0
    %591 = vmatprep.subr.mxu0 0.0
    %592 = vmatpush2.msra.mxu0 0.0
    %593 = vmatprep.subr.mxu0 0.0
    %594 = vmatpush2.msra.mxu0 0.0
    %595 = vmatprep.subr.mxu0 0.0
    %596 = vmatpush2.msra.mxu0 0.0
    %597 = vmatprep.subr.mxu0 0.0
    %598 = vmatpush2.msra.mxu0 0.0
    %599 = vmatprep.subr.mxu0 0.0
    %600 = vmatpush2.msra.mxu0 0.0
    %601 = vmatprep.subr.mxu0 0.0
    %602 = vmatpush2.msra.mxu0 0.0
    %603 = vmatprep.subr.mxu0 0.0
    %604 = vmatpush2.msra.mxu0 0.0
    %605 = vmatprep.subr.mxu0 0.0
    %606 = vmatpush2.msra.mxu0 0.0
    %607 = vmatprep.subr.mxu0 0.0
    %608 = vmatpush2.msra.mxu0 0.0
    %609 = vmatprep.subr.mxu0 0.0
    %610 = vmatpush2.msra.mxu0 0.0
    %611 = vmatprep.subr.mxu0 0.0
    %612 = vmatpush2.msra.mxu0 0.0
    %613 = vmatprep.subr.mxu0 0.0
    %614 = vmatpush2.msra.mxu0 0.0
    %615 = vmatprep.subr.mxu0 0.0
    %616 = vmatpush2.msra.mxu0 0.0
    %617 = vmatprep.subr.mxu0 0.0
    %618 = vmatpush2.msra.mxu0 0.0
    %619 = vmatprep.subr.mxu0 0.0
    %620 = vmatpush2.msra.mxu0 0.0
    %621 = vmatprep.mubr.f32.mxu0 0.0
    %622 = vmatmul.mubr.f32.gmra.mxu0 %v556
    %v623 = vpop.f32.mrf.mxu0
    %v624 = vadd.f32 0.0, %v623
    %v625 = vpop.f32.mrf.mxu0
    %626 = vdwg.mxu0
    %v628 = vrot.slane %v624, 4
    %v630 = vadd.f32 %v158, %v628
    %v631 = vtanh.pop %v630
    %v632 = vmul.f32 %v631, 0.5
    %v633 = vadd.f32 %v632, 0.5
    %v634 = vsel %vm74, %v631, %v633
    %v636 = vrot.slane %v634, 4
    %638 = vrot.lane.b32.xlu0 %v636, 123
    %v639 = vpop.permute.xlu0 %638
    %640 = vrot.lane.b32.xlu0 %v636, 118
    %v641 = vpop.permute.xlu0 %640
    %642 = vrot.lane.b32.xlu0 %v636, 113
    %v643 = vpop.permute.xlu0 %642
    %v644 = vmul.f32 %v639, %v554
    %v646 = vrot.slane %v641, 4
    %v648 = vmul.f32 %v634, %v646
    %v650 = vrot.slane %v648, 4
    %v652 = vadd.f32 %v644, %v650
    %v653 = vtanh.pop %v652
    %v654 = vmul.f32 %v643, %v653
    %655 = vmatprep.subr.mxu0 0.0
    %656 = vmatpush1.msra.mxu0 %v176
    %657 = vmatprep.subr.mxu0 0.0
    %658 = vmatpush1.msra.mxu0 %v175
    %659 = vmatprep.subr.mxu0 0.0
    %660 = vmatpush1.msra.mxu0 %v174
    %661 = vmatprep.subr.mxu0 0.0
    %662 = vmatpush1.msra.mxu0 %v173
    %663 = vmatprep.subr.mxu0 0.0
    %664 = vmatpush1.msra.mxu0 %v172
    %665 = vmatprep.subr.mxu0 0.0
    %666 = vmatpush1.msra.mxu0 %v171
    %667 = vmatprep.subr.mxu0 0.0
    %668 = vmatpush1.msra.mxu0 %v170
    %669 = vmatprep.subr.mxu0 0.0
    %670 = vmatpush1.msra.mxu0 %v169
    %671 = vmatprep.subr.mxu0 0.0
    %672 = vmatpush1.msra.mxu0 %v168
    %673 = vmatprep.subr.mxu0 0.0
    %674 = vmatpush1.msra.mxu0 %v167
    %675 = vmatprep.subr.mxu0 0.0
    %676 = vmatpush1.msra.mxu0 %v166
    %677 = vmatprep.subr.mxu0 0.0
    %678 = vmatpush1.msra.mxu0 %v165
    %679 = vmatprep.subr.mxu0 0.0
    %680 = vmatpush1.msra.mxu0 %v164
    %681 = vmatprep.subr.mxu0 0.0
    %682 = vmatpush1.msra.mxu0 %v163
    %683 = vmatprep.subr.mxu0 0.0
    %684 = vmatpush1.msra.mxu0 %v162
    %685 = vmatprep.subr.mxu0 0.0
    %686 = vmatpush1.msra.mxu0 %v161
    %687 = vmatprep.subr.mxu0 0.0
    %688 = vmatpush2.msra.mxu0 0.0
    %689 = vmatprep.subr.mxu0 0.0
    %690 = vmatpush2.msra.mxu0 0.0
    %691 = vmatprep.subr.mxu0 0.0
    %692 = vmatpush2.msra.mxu0 0.0
    %693 = vmatprep.subr.mxu0 0.0
    %694 = vmatpush2.msra.mxu0 0.0
    %695 = vmatprep.subr.mxu0 0.0
    %696 = vmatpush2.msra.mxu0 0.0
    %697 = vmatprep.subr.mxu0 0.0
    %698 = vmatpush2.msra.mxu0 0.0
    %699 = vmatprep.subr.mxu0 0.0
    %700 = vmatpush2.msra.mxu0 0.0
    %701 = vmatprep.subr.mxu0 0.0
    %702 = vmatpush2.msra.mxu0 0.0
    %703 = vmatprep.subr.mxu0 0.0
    %704 = vmatpush2.msra.mxu0 0.0
    %705 = vmatprep.subr.mxu0 0.0
    %706 = vmatpush2.msra.mxu0 0.0
    %707 = vmatprep.subr.mxu0 0.0
    %708 = vmatpush2.msra.mxu0 0.0
    %709 = vmatprep.subr.mxu0 0.0
    %710 = vmatpush2.msra.mxu0 0.0
    %711 = vmatprep.subr.mxu0 0.0
    %712 = vmatpush2.msra.mxu0 0.0
    %713 = vmatprep.subr.mxu0 0.0
    %714 = vmatpush2.msra.mxu0 0.0
    %715 = vmatprep.subr.mxu0 0.0
    %716 = vmatpush2.msra.mxu0 0.0
    %717 = vmatprep.subr.mxu0 0.0
    %718 = vmatpush2.msra.mxu0 0.0
    %719 = vmatprep.mubr.f32.mxu0 0.0
    %720 = vmatmul.mubr.f32.gmra.mxu0 %v654
    %v721 = vpop.f32.mrf.mxu0
    %v722 = vadd.f32 0.0, %v721
    %v723 = vpop.f32.mrf.mxu0
    %724 = vdwg.mxu0
    %v726 = vrot.slane %v722, 3
    %v728 = vadd.f32 %v158, %v726
    %v729 = vtanh.pop %v728
    %v730 = vmul.f32 %v729, 0.5
    %v731 = vadd.f32 %v730, 0.5
    %v732 = vsel %vm74, %v729, %v731
    %v734 = vrot.slane %v732, 5
    %736 = vrot.lane.b32.xlu0 %v734, 123
    %v737 = vpop.permute.xlu0 %736
    %738 = vrot.lane.b32.xlu0 %v734, 118
    %v739 = vpop.permute.xlu0 %738
    %740 = vrot.lane.b32.xlu0 %v734, 113
    %v741 = vpop.permute.xlu0 %740
    %v742 = vmul.f32 %v737, %v652
    %v744 = vrot.slane %v739, 3
    %v746 = vmul.f32 %v732, %v744
    %v748 = vrot.slane %v746, 5
    %v750 = vadd.f32 %v742, %v748
    %v751 = vtanh.pop %v750
    %v752 = vmul.f32 %v741, %v751
    %753 = vmatprep.subr.mxu0 0.0
    %754 = vmatpush1.msra.mxu0 %v176
    %755 = vmatprep.subr.mxu0 0.0
    %756 = vmatpush1.msra.mxu0 %v175
    %757 = vmatprep.subr.mxu0 0.0
    %758 = vmatpush1.msra.mxu0 %v174
    %759 = vmatprep.subr.mxu0 0.0
    %760 = vmatpush1.msra.mxu0 %v173
    %761 = vmatprep.subr.mxu0 0.0
    %762 = vmatpush1.msra.mxu0 %v172
    %763 = vmatprep.subr.mxu0 0.0
    %764 = vmatpush1.msra.mxu0 %v171
    %765 = vmatprep.subr.mxu0 0.0
    %766 = vmatpush1.msra.mxu0 %v170
    %767 = vmatprep.subr.mxu0 0.0
    %768 = vmatpush1.msra.mxu0 %v169
    %769 = vmatprep.subr.mxu0 0.0
    %770 = vmatpush1.msra.mxu0 %v168
    %771 = vmatprep.subr.mxu0 0.0
    %772 = vmatpush1.msra.mxu0 %v167
    %773 = vmatprep.subr.mxu0 0.0
    %774 = vmatpush1.msra.mxu0 %v166
    %775 = vmatprep.subr.mxu0 0.0
    %776 = vmatpush1.msra.mxu0 %v165
    %777 = vmatprep.subr.mxu0 0.0
    %778 = vmatpush1.msra.mxu0 %v164
    %779 = vmatprep.subr.mxu0 0.0
    %780 = vmatpush1.msra.mxu0 %v163
    %781 = vmatprep.subr.mxu0 0.0
    %782 = vmatpush1.msra.mxu0 %v162
    %783 = vmatprep.subr.mxu0 0.0
    %784 = vmatpush1.msra.mxu0 %v161
    %785 = vmatprep.subr.mxu0 0.0
    %786 = vmatpush2.msra.mxu0 0.0
    %787 = vmatprep.subr.mxu0 0.0
    %788 = vmatpush2.msra.mxu0 0.0
    %789 = vmatprep.subr.mxu0 0.0
    %790 = vmatpush2.msra.mxu0 0.0
    %791 = vmatprep.subr.mxu0 0.0
    %792 = vmatpush2.msra.mxu0 0.0
    %793 = vmatprep.subr.mxu0 0.0
    %794 = vmatpush2.msra.mxu0 0.0
    %795 = vmatprep.subr.mxu0 0.0
    %796 = vmatpush2.msra.mxu0 0.0
    %797 = vmatprep.subr.mxu0 0.0
    %798 = vmatpush2.msra.mxu0 0.0
    %799 = vmatprep.subr.mxu0 0.0
    %800 = vmatpush2.msra.mxu0 0.0
    %801 = vmatprep.subr.mxu0 0.0
    %802 = vmatpush2.msra.mxu0 0.0
    %803 = vmatprep.subr.mxu0 0.0
    %804 = vmatpush2.msra.mxu0 0.0
    %805 = vmatprep.subr.mxu0 0.0
    %806 = vmatpush2.msra.mxu0 0.0
    %807 = vmatprep.subr.mxu0 0.0
    %808 = vmatpush2.msra.mxu0 0.0
    %809 = vmatprep.subr.mxu0 0.0
    %810 = vmatpush2.msra.mxu0 0.0
    %811 = vmatprep.subr.mxu0 0.0
    %812 = vmatpush2.msra.mxu0 0.0
    %813 = vmatprep.subr.mxu0 0.0
    %814 = vmatpush2.msra.mxu0 0.0
    %815 = vmatprep.subr.mxu0 0.0
    %816 = vmatpush2.msra.mxu0 0.0
    %817 = vmatprep.mubr.f32.mxu0 0.0
    %818 = vmatmul.mubr.f32.gmra.mxu0 %v752
    %v819 = vpop.f32.mrf.mxu0
    %v820 = vadd.f32 0.0, %v819
    %v821 = vpop.f32.mrf.mxu0
    %822 = vdwg.mxu0
    %v824 = vrot.slane %v820, 2
    %v826 = vadd.f32 %v158, %v824
    %v827 = vtanh.pop %v826
    %v828 = vmul.f32 %v827, 0.5
    %v829 = vadd.f32 %v828, 0.5
    %v830 = vsel %vm74, %v827, %v829
    %v832 = vrot.slane %v830, 6
    %834 = vrot.lane.b32.xlu0 %v832, 123
    %v835 = vpop.permute.xlu0 %834
    %836 = vrot.lane.b32.xlu0 %v832, 118
    %v837 = vpop.permute.xlu0 %836
    %838 = vrot.lane.b32.xlu0 %v832, 113
    %v839 = vpop.permute.xlu0 %838
    %v840 = vmul.f32 %v835, %v750
    %v842 = vrot.slane %v837, 2
    %v844 = vmul.f32 %v830, %v842
    %v846 = vrot.slane %v844, 6
    %v848 = vadd.f32 %v840, %v846
    %v849 = vtanh.pop %v848
    %v850 = vmul.f32 %v839, %v849
    %851 = vmatprep.subr.mxu0 0.0
    %852 = vmatpush1.msra.mxu0 %v176
    %853 = vmatprep.subr.mxu0 0.0
    %854 = vmatpush1.msra.mxu0 %v175
    %855 = vmatprep.subr.mxu0 0.0
    %856 = vmatpush1.msra.mxu0 %v174
    %857 = vmatprep.subr.mxu0 0.0
    %858 = vmatpush1.msra.mxu0 %v173
    %859 = vmatprep.subr.mxu0 0.0
    %860 = vmatpush1.msra.mxu0 %v172
    %861 = vmatprep.subr.mxu0 0.0
    %862 = vmatpush1.msra.mxu0 %v171
    %863 = vmatprep.subr.mxu0 0.0
    %864 = vmatpush1.msra.mxu0 %v170
    %865 = vmatprep.subr.mxu0 0.0
    %866 = vmatpush1.msra.mxu0 %v169
    %867 = vmatprep.subr.mxu0 0.0
    %868 = vmatpush1.msra.mxu0 %v168
    %869 = vmatprep.subr.mxu0 0.0
    %870 = vmatpush1.msra.mxu0 %v167
    %871 = vmatprep.subr.mxu0 0.0
    %872 = vmatpush1.msra.mxu0 %v166
    %873 = vmatprep.subr.mxu0 0.0
    %874 = vmatpush1.msra.mxu0 %v165
    %875 = vmatprep.subr.mxu0 0.0
    %876 = vmatpush1.msra.mxu0 %v164
    %877 = vmatprep.subr.mxu0 0.0
    %878 = vmatpush1.msra.mxu0 %v163
    %879 = vmatprep.subr.mxu0 0.0
    %880 = vmatpush1.msra.mxu0 %v162
    %881 = vmatprep.subr.mxu0 0.0
    %882 = vmatpush1.msra.mxu0 %v161
    %883 = vmatprep.subr.mxu0 0.0
    %884 = vmatpush2.msra.mxu0 0.0
    %885 = vmatprep.subr.mxu0 0.0
    %886 = vmatpush2.msra.mxu0 0.0
    %887 = vmatprep.subr.mxu0 0.0
    %888 = vmatpush2.msra.mxu0 0.0
    %889 = vmatprep.subr.mxu0 0.0
    %890 = vmatpush2.msra.mxu0 0.0
    %891 = vmatprep.subr.mxu0 0.0
    %892 = vmatpush2.msra.mxu0 0.0
    %893 = vmatprep.subr.mxu0 0.0
    %894 = vmatpush2.msra.mxu0 0.0
    %895 = vmatprep.subr.mxu0 0.0
    %896 = vmatpush2.msra.mxu0 0.0
    %897 = vmatprep.subr.mxu0 0.0
    %898 = vmatpush2.msra.mxu0 0.0
    %899 = vmatprep.subr.mxu0 0.0
    %900 = vmatpush2.msra.mxu0 0.0
    %901 = vmatprep.subr.mxu0 0.0
    %902 = vmatpush2.msra.mxu0 0.0
    %903 = vmatprep.subr.mxu0 0.0
    %904 = vmatpush2.msra.mxu0 0.0
    %905 = vmatprep.subr.mxu0 0.0
    %906 = vmatpush2.msra.mxu0 0.0
    %907 = vmatprep.subr.mxu0 0.0
    %908 = vmatpush2.msra.mxu0 0.0
    %909 = vmatprep.subr.mxu0 0.0
    %910 = vmatpush2.msra.mxu0 0.0
    %911 = vmatprep.subr.mxu0 0.0
    %912 = vmatpush2.msra.mxu0 0.0
    %913 = vmatprep.subr.mxu0 0.0
    %914 = vmatpush2.msra.mxu0 0.0
    %915 = vmatprep.mubr.f32.mxu0 0.0
    %916 = vmatmul.mubr.f32.gmra.mxu0 %v850
    %v917 = vpop.f32.mrf.mxu0
    %v918 = vadd.f32 0.0, %v917
    %v919 = vpop.f32.mrf.mxu0
    %920 = vdwg.mxu0
    %v922 = vrot.slane %v918, 1
    %v924 = vadd.f32 %v158, %v922
    %v925 = vtanh.pop %v924
    %v926 = vmul.f32 %v925, 0.5
    %v927 = vadd.f32 %v926, 0.5
    %v928 = vsel %vm74, %v925, %v927
    %v930 = vrot.slane %v928, 7
    %932 = vrot.lane.b32.xlu0 %v930, 123
    %v933 = vpop.permute.xlu0 %932
    %934 = vrot.lane.b32.xlu0 %v930, 118
    %v935 = vpop.permute.xlu0 %934
    %936 = vrot.lane.b32.xlu0 %v930, 113
    %v937 = vpop.permute.xlu0 %936
    %v938 = vmul.f32 %v933, %v848
    %v940 = vrot.slane %v935, 1
    %v942 = vmul.f32 %v928, %v940
    %v944 = vrot.slane %v942, 7
    %v946 = vadd.f32 %v938, %v944
    %v947 = vtanh.pop %v946
    %v948 = vmul.f32 %v937, %v947
    %v950 = vrot.slane %v360, 7
    %v953 = vrot.slane %v458, 6
    %v956 = vrot.slane %v556, 5
    %v959 = vrot.slane %v654, 4
    %v962 = vrot.slane %v752, 3
    %v965 = vrot.slane %v850, 2
    %v968 = vrot.slane %v948, 1
    %vm970 = vcmask 1040384
    %v971 = vsel %vm970, %v262, %v950
    %vm972 = vcmask 1041408
    %v973 = vsel %vm972, %v971, %v953
    %vm974 = vcmask 1042432
    %v975 = vsel %vm974, %v973, %v956
    %vm976 = vcmask 1043456
    %v977 = vsel %vm976, %v975, %v959
    %vm978 = vcmask 1044480
    %v979 = vsel %vm978, %v977, %v962
    %vm980 = vcmask 1045504
    %v981 = vsel %vm980, %v979, %v965
    %vm982 = vcmask 1046528
    %v983 = vsel %vm982, %v981, %v968
    %v984 = vmax.f32 %v983, 0.0
    %v985 = vld [vmem:[#allocation4] sm:$0xff]
    %v986 = vld [vmem:[#allocation4 + $0x8] sm:$0xff]
    %v987 = vld [vmem:[#allocation4 + $0x10] sm:$0xff]
    %v988 = vld [vmem:[#allocation4 + $0x18] sm:$0xff]
    %v989 = vld [vmem:[#allocation4 + $0x20] sm:$0xff]
    %v990 = vld [vmem:[#allocation4 + $0x28] sm:$0xff]
    %v991 = vld [vmem:[#allocation4 + $0x30] sm:$0xff]
    %v992 = vld [vmem:[#allocation4 + $0x38] sm:$0xff]
    %v993 = vld [vmem:[#allocation4 + $0x40] sm:$0xff]
    %v994 = vld [vmem:[#allocation4 + $0x48] sm:$0xff]
    %v995 = vld [vmem:[#allocation4 + $0x50] sm:$0xff]
    %v996 = vld [vmem:[#allocation4 + $0x58] sm:$0xff]
    %v997 = vld [vmem:[#allocation4 + $0x60] sm:$0xff]
    %v998 = vld [vmem:[#allocation4 + $0x68] sm:$0xff]
    %v999 = vld [vmem:[#allocation4 + $0x70] sm:$0xff]
    %v1000 = vld [vmem:[#allocation4 + $0x78] sm:$0xff]
    %v1001 = vld [vmem:[%s5] sm:$0x1]
    %v1003 = vlaneseq
    %v1004 = vshrl.u32 %v1003, 7
    %v1005 = vsub.s32 0, %v1004
    %v1006 = vrot.slane %v1001, %v1005
    %1008 = vmatprep.subr.mxu0 0.0
    %1009 = vmatpush1.msra.mxu0 %v1000
    %1010 = vmatprep.subr.mxu0 0.0
    %1011 = vmatpush1.msra.mxu0 %v999
    %1012 = vmatprep.subr.mxu0 0.0
    %1013 = vmatpush1.msra.mxu0 %v998
    %1014 = vmatprep.subr.mxu0 0.0
    %1015 = vmatpush1.msra.mxu0 %v997
    %1016 = vmatprep.subr.mxu0 0.0
    %1017 = vmatpush1.msra.mxu0 %v996
    %1018 = vmatprep.subr.mxu0 0.0
    %1019 = vmatpush1.msra.mxu0 %v995
    %1020 = vmatprep.subr.mxu0 0.0
    %1021 = vmatpush1.msra.mxu0 %v994
    %1022 = vmatprep.subr.mxu0 0.0
    %1023 = vmatpush1.msra.mxu0 %v993
    %1024 = vmatprep.subr.mxu0 0.0
    %1025 = vmatpush1.msra.mxu0 %v992
    %1026 = vmatprep.subr.mxu0 0.0
    %1027 = vmatpush1.msra.mxu0 %v991
    %1028 = vmatprep.subr.mxu0 0.0
    %1029 = vmatpush1.msra.mxu0 %v990
    %1030 = vmatprep.subr.mxu0 0.0
    %1031 = vmatpush1.msra.mxu0 %v989
    %1032 = vmatprep.subr.mxu0 0.0
    %1033 = vmatpush1.msra.mxu0 %v988
    %1034 = vmatprep.subr.mxu0 0.0
    %1035 = vmatpush1.msra.mxu0 %v987
    %1036 = vmatprep.subr.mxu0 0.0
    %1037 = vmatpush1.msra.mxu0 %v986
    %1038 = vmatprep.subr.mxu0 0.0
    %1039 = vmatpush1.msra.mxu0 %v985
    %1040 = vmatprep.subr.mxu0 0.0
    %1041 = vmatpush2.msra.mxu0 0.0
    %1042 = vmatprep.subr.mxu0 0.0
    %1043 = vmatpush2.msra.mxu0 0.0
    %1044 = vmatprep.subr.mxu0 0.0
    %1045 = vmatpush2.msra.mxu0 0.0
    %1046 = vmatprep.subr.mxu0 0.0
    %1047 = vmatpush2.msra.mxu0 0.0
    %1048 = vmatprep.subr.mxu0 0.0
    %1049 = vmatpush2.msra.mxu0 0.0
    %1050 = vmatprep.subr.mxu0 0.0
    %1051 = vmatpush2.msra.mxu0 0.0
    %1052 = vmatprep.subr.mxu0 0.0
    %1053 = vmatpush2.msra.mxu0 0.0
    %1054 = vmatprep.subr.mxu0 0.0
    %1055 = vmatpush2.msra.mxu0 0.0
    %1056 = vmatprep.subr.mxu0 0.0
    %1057 = vmatpush2.msra.mxu0 0.0
    %1058 = vmatprep.subr.mxu0 0.0
    %1059 = vmatpush2.msra.mxu0 0.0
    %1060 = vmatprep.subr.mxu0 0.0
    %1061 = vmatpush2.msra.mxu0 0.0
    %1062 = vmatprep.subr.mxu0 0.0
    %1063 = vmatpush2.msra.mxu0 0.0
    %1064 = vmatprep.subr.mxu0 0.0
    %1065 = vmatpush2.msra.mxu0 0.0
    %1066 = vmatprep.subr.mxu0 0.0
    %1067 = vmatpush2.msra.mxu0 0.0
    %1068 = vmatprep.subr.mxu0 0.0
    %1069 = vmatpush2.msra.mxu0 0.0
    %1070 = vmatprep.subr.mxu0 0.0
    %1071 = vmatpush2.msra.mxu0 0.0
    %1072 = vmatprep.mubr.f32.mxu0 0.0
    %1073 = vmatmul.mubr.f32.gmra.mxu0 %v984
    %v1074 = vpop.f32.mrf.mxu0
    %v1075 = vadd.f32 %v1006, %v1074
    %v1076 = vpop.f32.mrf.mxu0
    %1077 = vdwg.mxu0
    %v1078 = vmax.f32 %v1075, 0.0
    %v1079 = vld [vmem:[#allocation6] sm:$0xff]
    %v1080 = vld [vmem:[#allocation6 + $0x8] sm:$0xff]
    %v1081 = vld [vmem:[#allocation6 + $0x10] sm:$0xff]
    %v1082 = vld [vmem:[#allocation6 + $0x18] sm:$0xff]
    %v1083 = vld [vmem:[#allocation6 + $0x20] sm:$0xff]
    %v1084 = vld [vmem:[#allocation6 + $0x28] sm:$0xff]
    %v1085 = vld [vmem:[#allocation6 + $0x30] sm:$0xff]
    %v1086 = vld [vmem:[#allocation6 + $0x38] sm:$0xff]
    %v1087 = vld [vmem:[#allocation6 + $0x40] sm:$0xff]
    %v1088 = vld [vmem:[#allocation6 + $0x48] sm:$0xff]
    %v1089 = vld [vmem:[#allocation6 + $0x50] sm:$0xff]
    %v1090 = vld [vmem:[#allocation6 + $0x58] sm:$0xff]
    %v1091 = vld [vmem:[#allocation6 + $0x60] sm:$0xff]
    %v1092 = vld [vmem:[#allocation6 + $0x68] sm:$0xff]
    %v1093 = vld [vmem:[#allocation6 + $0x70] sm:$0xff]
    %v1094 = vld [vmem:[#allocation6 + $0x78] sm:$0xff]
    %v1095 = vld [vmem:[%s7] sm:$0x1]
    %v1097 = vlaneseq
    %v1098 = vshrl.u32 %v1097, 7
    %v1099 = vsub.s32 0, %v1098
    %v1100 = vrot.slane %v1095, %v1099
    %1102 = vmatprep.subr.mxu0 0.0
    %1103 = vmatpush1.msra.mxu0 %v1094
    %1104 = vmatprep.subr.mxu0 0.0
    %1105 = vmatpush1.msra.mxu0 %v1093
    %1106 = vmatprep.subr.mxu0 0.0
    %1107 = vmatpush1.msra.mxu0 %v1092
    %1108 = vmatprep.subr.mxu0 0.0
    %1109 = vmatpush1.msra.mxu0 %v1091
    %1110 = vmatprep.subr.mxu0 0.0
    %1111 = vmatpush1.msra.mxu0 %v1090
    %1112 = vmatprep.subr.mxu0 0.0
    %1113 = vmatpush1.msra.mxu0 %v1089
    %1114 = vmatprep.subr.mxu0 0.0
    %1115 = vmatpush1.msra.mxu0 %v1088
    %1116 = vmatprep.subr.mxu0 0.0
    %1117 = vmatpush1.msra.mxu0 %v1087
    %1118 = vmatprep.subr.mxu0 0.0
    %1119 = vmatpush1.msra.mxu0 %v1086
    %1120 = vmatprep.subr.mxu0 0.0
    %1121 = vmatpush1.msra.mxu0 %v1085
    %1122 = vmatprep.subr.mxu0 0.0
    %1123 = vmatpush1.msra.mxu0 %v1084
    %1124 = vmatprep.subr.mxu0 0.0
    %1125 = vmatpush1.msra.mxu0 %v1083
    %1126 = vmatprep.subr.mxu0 0.0
    %1127 = vmatpush1.msra.mxu0 %v1082
    %1128 = vmatprep.subr.mxu0 0.0
    %1129 = vmatpush1.msra.mxu0 %v1081
    %1130 = vmatprep.subr.mxu0 0.0
    %1131 = vmatpush1.msra.mxu0 %v1080
    %1132 = vmatprep.subr.mxu0 0.0
    %1133 = vmatpush1.msra.mxu0 %v1079
    %1134 = vmatprep.subr.mxu0 0.0
    %1135 = vmatpush2.msra.mxu0 0.0
    %1136 = vmatprep.subr.mxu0 0.0
    %1137 = vmatpush2.msra.mxu0 0.0
    %1138 = vmatprep.subr.mxu0 0.0
    %1139 = vmatpush2.msra.mxu0 0.0
    %1140 = vmatprep.subr.mxu0 0.0
    %1141 = vmatpush2.msra.mxu0 0.0
    %1142 = vmatprep.subr.mxu0 0.0
    %1143 = vmatpush2.msra.mxu0 0.0
    %1144 = vmatprep.subr.mxu0 0.0
    %1145 = vmatpush2.msra.mxu0 0.0
    %1146 = vmatprep.subr.mxu0 0.0
    %1147 = vmatpush2.msra.mxu0 0.0
    %1148 = vmatprep.subr.mxu0 0.0
    %1149 = vmatpush2.msra.mxu0 0.0
    %1150 = vmatprep.subr.mxu0 0.0
    %1151 = vmatpush2.msra.mxu0 0.0
    %1152 = vmatprep.subr.mxu0 0.0
    %1153 = vmatpush2.msra.mxu0 0.0
    %1154 = vmatprep.subr.mxu0 0.0
    %1155 = vmatpush2.msra.mxu0 0.0
    %1156 = vmatprep.subr.mxu0 0.0
    %1157 = vmatpush2.msra.mxu0 0.0
    %1158 = vmatprep.subr.mxu0 0.0
    %1159 = vmatpush2.msra.mxu0 0.0
    %1160 = vmatprep.subr.mxu0 0.0
    %1161 = vmatpush2.msra.mxu0 0.0
    %1162 = vmatprep.subr.mxu0 0.0
    %1163 = vmatpush2.msra.mxu0 0.0
    %1164 = vmatprep.subr.mxu0 0.0
    %1165 = vmatpush2.msra.mxu0 0.0
    %1166 = vmatprep.mubr.f32.mxu0 0.0
    %1167 = vmatmul.mubr.f32.gmra.mxu0 %v1078
    %v1168 = vpop.f32.mrf.mxu0
    %v1169 = vadd.f32 %v1100, %v1168
    %v1170 = vpop.f32.mrf.mxu0
    %1171 = vdwg.mxu0
    %1172 = vst [vmem:[%s8] sm:$0xff] %v1169
    // Predicated region
    $region46: #{lstm_system_forward.1} parent=1 // pred_check
      _
    $region47: #{lstm_system_forward.1} parent=1 // pred_check_branch
      %1174 = sbr.rel (0) target = $region49
    $region48: #{lstm_system_forward.1} parent=1 // pred_region
      _
    $region49: #{lstm_system_forward.1} parent=1 // pred_fallthru
      _
    // Predicated region
    $region50: #{lstm_system_forward.1} parent=1 // pred_check
      _
    $region51: #{lstm_system_forward.1} parent=1 // pred_check_branch
      %1176 = sbr.rel (0) target = $region53
    $region52: #{lstm_system_forward.1} parent=1 // pred_region
      _
    $region53: #{lstm_system_forward.1} parent=1 // pred_fallthru
      _
    %1177 = vsyncpa [#allocation3], 1
    %1178 = vsyncpa [#allocation5], 1

</llo_original>
